<compile_context>
chip_gen: v7x
topology: tpu7x:2x2x1
jax: 0.10.0
libtpu: 0.0.40
codegen_flags: <defaults>
</compile_context>

<pallas_src>
import jax
import jax.numpy as jnp
from jax.experimental import pallas as pl
from jax.experimental.pallas import tpu as pltpu


def _sigmoid(x):
    return 1.0 / (1.0 + jnp.exp(-x))


def se_layer_kernel(x_ref, w1t_ref, w2t_ref, o_ref):
    # x_ref / o_ref: (tile_b, C, T); w1t_ref: (C, Cr); w2t_ref: (Cr, C)
    inv_t = 1.0 / x_ref.shape[-1]

    # Squeeze: AdaptiveAvgPool1d(1) == mean over T, accumulated in f32.
    # Load only for the reduction; do NOT keep the slab live across the MLP.
    y = jnp.sum(x_ref[...], axis=-1, dtype=jnp.float32) * inv_t      # (tile_b, C)

    # Excitation: Linear(C -> Cr, no bias) + Swish, Linear(Cr -> C) + Sigmoid.
    h = jnp.dot(y.astype(w1t_ref.dtype), w1t_ref[...],
                preferred_element_type=jnp.float32)
    h = h * _sigmoid(h)                                              # Swish
    s = _sigmoid(jnp.dot(h.astype(w2t_ref.dtype), w2t_ref[...],
                         preferred_element_type=jnp.float32))        # (tile_b, C)

    # Scale: re-read x from VMEM and stream load -> mul -> store (lane-dense
    # when T % 128 == 0), in x's native dtype.
    o_ref[...] = x_ref[...] * s.astype(o_ref.dtype)[:, :, None]


def _vmem_budget_bytes():
    """~3/4 of physical VMEM: ~96 MiB on v5e/v6e (128 MiB), ~48 MiB on v7x (64 MiB/TC)."""
    try:
        cap = int(pltpu.get_tpu_info().vmem_capacity_bytes)
    except Exception:
        cap = 64 * 1024 * 1024   # conservative fallback, safe on all generations
    return (cap * 3) // 4


def _pick_tiling(B, bytes_per_batch, resident_bytes, budget):
    """Pick (tile_b, grid_steps).

    Accounts for double-buffered input + output slabs (4x block bytes) plus the
    resident weight blocks.  Bandwidth-bound kernel => fewest, largest blocks,
    but guarantee >=2 grid steps when B > 1 (DMA/compute overlap + v7x
    megacore) and prefer an even step count for TensorCore balance.
    """
    avail = max(budget - resident_bytes, 4 * bytes_per_batch)
    fit_tb = max(1, avail // (4 * bytes_per_batch))
    steps = pl.cdiv(B, fit_tb)
    if B > 1:
        steps = max(steps, 2)
        if steps % 2:
            steps += 1
    steps = max(1, min(steps, B))
    tile_b = pl.cdiv(B, steps)
    steps = pl.cdiv(B, tile_b)
    return tile_b, steps


def _weight_spec(shape):
    """Resident weight block (constant block index); single-buffered when supported."""
    try:
        return pl.BlockSpec(shape, lambda i: (0, 0), pipeline_mode=pl.Buffered(1))
    except Exception:
        return pl.BlockSpec(shape, lambda i: (0, 0))


@jax.jit
def se_layer(x, w1, w2):
    """x: (B, C, T); w1: (C//r, C); w2: (C, C//r) (PyTorch nn.Linear layout)."""
    B, C, T = x.shape
    Cr = w1.shape[0]
    assert w1.shape == (Cr, C) and w2.shape == (C, Cr)

    # Host-side weight transpose: plain `y @ w1t` / `h @ w2t`, no in-kernel XLU.
    w1t = w1.T   # (C, Cr)
    w2t = w2.T   # (Cr, C)

    budget = _vmem_budget_bytes()
    bytes_per_batch = C * T * x.dtype.itemsize
    # Count weights at 2x (worst-case double-buffering) in the budget.
    weight_bytes = 2 * (w1t.size * w1t.dtype.itemsize +
                        w2t.size * w2t.dtype.itemsize)
    tile_b, steps = _pick_tiling(B, bytes_per_batch, weight_bytes, budget)

    extra_kwargs = {}
    if B % tile_b == 0:
        # Output blocks exactly overwrite input blocks already copied to VMEM
        # => safe to alias; lets XLA donate x's HBM buffer.
        extra_kwargs["input_output_aliases"] = {0: 0}

    return pl.pallas_call(
        se_layer_kernel,
        out_shape=jax.ShapeDtypeStruct((B, C, T), x.dtype),
        grid=(steps,),
        in_specs=[
            # Full (C, T) extent per block keeps pool/MLP/scale fused, reads x
            # from HBM exactly once, and satisfies the (8,128) rule for any C/T.
            pl.BlockSpec((tile_b, C, T), lambda i: (i, 0, 0)),
            _weight_spec((C, Cr)),
            _weight_spec((Cr, C)),
        ],
        out_specs=pl.BlockSpec((tile_b, C, T), lambda i: (i, 0, 0)),
        compiler_params=pltpu.CompilerParams(
            dimension_semantics=("parallel",),   # megacore sharding on v7x
            vmem_limit_bytes=int(budget),
        ),
        **extra_kwargs,
    )(x, w1t, w2t)


if __name__ == "__main__":
    # Small shapes consistent with the forward: (b, c, T); T=128 keeps the
    # lane (last) dimension dense so output stores are unmasked.
    B, C, T = 4, 16, 128
    reduction = 2
    Cr = C // reduction

    key = jax.random.PRNGKey(0)
    kx, k1, k2 = jax.random.split(key, 3)

    x = jax.random.normal(kx, (B, C, T), dtype=jnp.float32)

    # Deterministic parameter init (Kaiming-uniform-like scale, nn.Linear layout).
    bound1 = 1.0 / (C ** 0.5)
    bound2 = 1.0 / (Cr ** 0.5)
    w1 = jax.random.uniform(k1, (Cr, C), jnp.float32, -bound1, bound1)  # Linear(C, C//r).weight
    w2 = jax.random.uniform(k2, (C, Cr), jnp.float32, -bound2, bound2)  # Linear(C//r, C).weight

    out = se_layer(x, w1, w2)
    jax.block_until_ready(out)

    # Pure-JAX reference (matches PyTorch SELayer.forward).
    y_ref = jnp.mean(x, axis=-1)
    h_ref = y_ref @ w1.T
    h_ref = h_ref * (1.0 / (1.0 + jnp.exp(-h_ref)))    # Swish
    s_ref = 1.0 / (1.0 + jnp.exp(-(h_ref @ w2.T)))     # Sigmoid
    ref = x * s_ref[:, :, None]
    assert jnp.allclose(out, ref, atol=1e-5, rtol=1e-5), "mismatch vs reference"

    print("KERNEL_OK")
</pallas_src>

<mosaic_0001>
module attributes {stable_mosaic.version = 11 : i64} {
  func.func @se_layer_kernel(%arg0: i32, %arg1: memref<2x16x128xf32, #tpu.memory_space<vmem>>, %arg2: memref<16x8xf32, #tpu.memory_space<vmem>>, %arg3: memref<8x16xf32, #tpu.memory_space<vmem>>, %arg4: memref<2x16x128xf32, #tpu.memory_space<vmem>>) attributes {dimension_semantics = [#tpu.dimension_semantics<parallel>], iteration_bounds = array<i64: 2>, scalar_prefetch = 0 : i64, scratch_operands = 0 : i64, tpu.core_type = #tpu.core_type<tc>, window_params = [{transform_indices = @transform_0, window_bounds = array<i64: 2, 16, 128>}, {pipeline_mode = #tpu.pipeline_mode<synchronous>, transform_indices = @transform_1, window_bounds = array<i64: 16, 8>}, {pipeline_mode = #tpu.pipeline_mode<synchronous>, transform_indices = @transform_2, window_bounds = array<i64: 8, 16>}, {transform_indices = @transform_3, window_bounds = array<i64: 2, 16, 128>}]} {
    %c0 = arith.constant 0 : index
    %c0_0 = arith.constant 0 : index
    %c0_1 = arith.constant 0 : index
    %0 = vector.load %arg1[%c0, %c0_0, %c0_1] : memref<2x16x128xf32, #tpu.memory_space<vmem>>, vector<2x16x128xf32>
    %cst = arith.constant dense<0.000000e+00> : vector<2x16xf32>
    %1 = vector.multi_reduction <add>, %0, %cst [2] : vector<2x16x128xf32> to vector<2x16xf32>
    %cst_2 = arith.constant 7.812500e-03 : f32
    %2 = vector.broadcast %cst_2 : f32 to vector<2x16xf32>
    %3 = arith.mulf %1, %2 : vector<2x16xf32>
    %c0_3 = arith.constant 0 : index
    %c0_4 = arith.constant 0 : index
    %4 = vector.load %arg2[%c0_3, %c0_4] : memref<16x8xf32, #tpu.memory_space<vmem>>, vector<16x8xf32>
    %cst_5 = arith.constant dense<0.000000e+00> : vector<2x8xf32>
    %5 = tpu.matmul %3, %4, %cst_5 {dimension_numbers = #tpu.dot_dimension_numbers<[1], [0], [0], [1], [0, 0, 1, 1], [], []>} : vector<2x16xf32>, vector<16x8xf32>, vector<2x8xf32> -> vector<2x8xf32>
    %cst_6 = arith.constant 0.000000e+00 : f32
    %6 = vector.broadcast %cst_6 : f32 to vector<2x8xf32>
    %7 = arith.subf %6, %5 : vector<2x8xf32>
    %8 = math.exp %7 : vector<2x8xf32>
    %cst_7 = arith.constant 1.000000e+00 : f32
    %9 = vector.broadcast %cst_7 : f32 to vector<2x8xf32>
    %10 = arith.addf %9, %8 : vector<2x8xf32>
    %cst_8 = arith.constant 1.000000e+00 : f32
    %11 = vector.broadcast %cst_8 : f32 to vector<2x8xf32>
    %12 = arith.divf %11, %10 : vector<2x8xf32>
    %13 = arith.mulf %5, %12 : vector<2x8xf32>
    %c0_9 = arith.constant 0 : index
    %c0_10 = arith.constant 0 : index
    %14 = vector.load %arg3[%c0_9, %c0_10] : memref<8x16xf32, #tpu.memory_space<vmem>>, vector<8x16xf32>
    %cst_11 = arith.constant dense<0.000000e+00> : vector<2x16xf32>
    %15 = tpu.matmul %13, %14, %cst_11 {dimension_numbers = #tpu.dot_dimension_numbers<[1], [0], [0], [1], [0, 0, 1, 1], [], []>} : vector<2x8xf32>, vector<8x16xf32>, vector<2x16xf32> -> vector<2x16xf32>
    %cst_12 = arith.constant 0.000000e+00 : f32
    %16 = vector.broadcast %cst_12 : f32 to vector<2x16xf32>
    %17 = arith.subf %16, %15 : vector<2x16xf32>
    %18 = math.exp %17 : vector<2x16xf32>
    %cst_13 = arith.constant 1.000000e+00 : f32
    %19 = vector.broadcast %cst_13 : f32 to vector<2x16xf32>
    %20 = arith.addf %19, %18 : vector<2x16xf32>
    %cst_14 = arith.constant 1.000000e+00 : f32
    %21 = vector.broadcast %cst_14 : f32 to vector<2x16xf32>
    %22 = arith.divf %21, %20 : vector<2x16xf32>
    %c0_15 = arith.constant 0 : index
    %c0_16 = arith.constant 0 : index
    %c0_17 = arith.constant 0 : index
    %23 = vector.load %arg1[%c0_15, %c0_16, %c0_17] : memref<2x16x128xf32, #tpu.memory_space<vmem>>, vector<2x16x128xf32>
    %24 = vector.shape_cast %22 : vector<2x16xf32> to vector<2x16x1xf32>
    %25 = vector.broadcast %24 : vector<2x16x1xf32> to vector<2x16x128xf32>
    %26 = arith.mulf %23, %25 : vector<2x16x128xf32>
    %c0_18 = arith.constant 0 : index
    %c0_19 = arith.constant 0 : index
    %c0_20 = arith.constant 0 : index
    %27 = vector.load %arg4[%c0_18, %c0_19, %c0_20] : memref<2x16x128xf32, #tpu.memory_space<vmem>>, vector<2x16x128xf32>
    tpu.vector_store %arg4[%c0_18, %c0_19, %c0_20], %26 {strides = array<i32>} : memref<2x16x128xf32, #tpu.memory_space<vmem>>, vector<2x16x128xf32>,
    return
  }
  func.func @transform_0(%arg0: i32) -> (i32, i32, i32) {
    %c0_i32 = arith.constant 0 : i32
    %c0_i32_0 = arith.constant 0 : i32
    %c0_i32_1 = arith.constant 0 : i32
    return %arg0, %c0_i32, %c0_i32_0 : i32, i32, i32
  }
  func.func @transform_1(%arg0: i32) -> (i32, i32) {
    %c0_i32 = arith.constant 0 : i32
    %c0_i32_0 = arith.constant 0 : i32
    %c0_i32_1 = arith.constant 0 : i32
    return %c0_i32, %c0_i32_0 : i32, i32
  }
  func.func @transform_2(%arg0: i32) -> (i32, i32) {
    %c0_i32 = arith.constant 0 : i32
    %c0_i32_0 = arith.constant 0 : i32
    %c0_i32_1 = arith.constant 0 : i32
    return %c0_i32, %c0_i32_0 : i32, i32
  }
  func.func @transform_3(%arg0: i32) -> (i32, i32, i32) {
    %c0_i32 = arith.constant 0 : i32
    %c0_i32_0 = arith.constant 0 : i32
    %c0_i32_1 = arith.constant 0 : i32
    return %arg0, %c0_i32, %c0_i32_0 : i32, i32, i32
  }
}

</mosaic_0001>

<llo_original>
// kernel: se_layer.1
$region0: #{se_layer.1}
  #allocation0 [shape = 'u32[]', space=smem, size = 0x4, offset = 0x4, fixed_abs, tag = 'smem constant byte address 0x4 - core index']
  #allocation1 [shape = 'u32[144,128]{1,0:T(1,128)}', space=vmem, size = 0x12000, scoped, tag = 'internal scratch']
  %s0 = inlined_call_operand.hbm [shape: f32[4,16,128], index: 0, kind: input, shape index: {}, may-alias: {0,3}]
  %s1 = inlined_call_operand.vmem [shape: f32[16,8], index: 1, kind: input, shape index: {}]
  %s2 = inlined_call_operand.vmem [shape: f32[8,16], index: 2, kind: input, shape index: {}]
  %s3 = inlined_call_operand.hbm [shape: f32[4,16,128], index: 3, kind: output, shape index: {}, may-alias: {0,3}]
  %s4 = sld [smem:[#allocation0]]
  $region49: #{se_layer.1} parent=0
    _
  %s6 = ssub.s32 1, %s4
  %s7 = scalar_select 0, %s6, %s4
  $region1: #{se_layer.1} parent=0
    #allocation2 [shape = 'u8[32768]{0}', space=vmem, size = 0x8000, scoped, tag = 'input window, operand 0']
    #allocation3 [shape = 's32[2]{0}', space=sflag, size = 0x8, scoped, tag = 'scoped memory for se_layer.1']
    #allocation4 [shape = 's32[2]{0}', space=sflag, size = 0x8, scoped, tag = 'scoped memory for se_layer.1']
    #allocation5 [shape = 'u8[32768]{0}', space=vmem, size = 0x8000, scoped, tag = 'output window, operand 0']
    %8 = vsyncpa [#allocation3], 0
    %s9 = scalar_lea.sflag [#allocation3], 1
    %10 = vsyncpa %s9, 0
    %11 = vsyncpa [#allocation4], 0
    %s12 = scalar_lea.sflag [#allocation4], 1
    %13 = vsyncpa %s12, 0
    loop: start=0, step=1, limit=4
    $region2: #{se_layer.1} parent=1 // loop_pre_header
      _
    $region3: #{se_layer.1} parent=1 // loop_header
      %s15 = sphi 0, %s19
      %p16 = scmp.ge.s32.totalorder %s15, 4
      %s25 = sphi 0, %s27
      %s28 = sphi 0, %s25
      %s29 = sphi 0, %s28
      %s45 = sphi 0, %s29
      %s49 = sphi 0, %s49
      %s51 = sphi 0, %s49
      %s52 = sphi 0, %s51
      %s66 = sphi 0, %s52
      %s70 = sphi 0, %s70
      %s72 = sphi 0, %s70
      %s73 = sphi 0, %s72
      %s87 = sphi 0, %s73
      %s93 = sphi 0, %s95
      %s96 = sphi 0, %s93
      %s97 = sphi 0, %s96
      %s113 = sphi 0, %s97
    $region4: #{se_layer.1} parent=1 // loop_header_branch
      %18 = sbr.rel (%p16) target = $region8
    $region5: #{se_layer.1} parent=1 // loop_body
      %s20 = ssub.s32 %s15, 1
      %s21 = ssub.s32 %s15, 2
      %s22 = sadd.s32 %s15, 1
      %s23 = ssub.s32 %s15, %s22
      %p24 = scmp.eq.s32.totalorder %s23, 0
      %s26 = sadd.s32 %s25, 1
      %s27 = scalar_select %p24, %s25, %s26
      %p30 = pneg %p24
      %p31 = scmp.eq.s32.totalorder %s15, 1
      %p32 = por %p30, %p31
      %p33 = scmp.ne.s32.totalorder %s25, %s28
      %p34 = scmp.eq.s32.totalorder %s15, 0
      %p35 = por %p33, %p34
      %p36 = scmp.ne.s32.totalorder %s25, %s28
      %p37 = scmp.eq.s32.totalorder %s20, 1
      %p38 = por %p36, %p37
      %p39 = scmp.ne.s32.totalorder %s28, %s29
      %p40 = scmp.eq.s32.totalorder %s20, 0
      %p41 = por %p39, %p40
      %p42 = scmp.ne.s32.totalorder %s28, %s29
      %p43 = scmp.eq.s32.totalorder %s21, 1
      %p44 = por %p42, %p43
      %p46 = scmp.ne.s32.totalorder %s29, %s45
      %p47 = scmp.eq.s32.totalorder %s21, 0
      %p48 = por %p46, %p47
      %s50 = sadd.s32 %s49, 1
      %p53 = scmp.eq.s32.totalorder %s15, 1
      %p54 = scmp.ne.s32.totalorder %s49, %s51
      %p55 = scmp.eq.s32.totalorder %s15, 0
      %p56 = por %p54, %p55
      %p57 = scmp.ne.s32.totalorder %s49, %s51
      %p58 = scmp.eq.s32.totalorder %s20, 1
      %p59 = por %p57, %p58
      %p60 = scmp.ne.s32.totalorder %s51, %s52
      %p61 = scmp.eq.s32.totalorder %s20, 0
      %p62 = por %p60, %p61
      %p63 = scmp.ne.s32.totalorder %s51, %s52
      %p64 = scmp.eq.s32.totalorder %s21, 1
      %p65 = por %p63, %p64
      %p67 = scmp.ne.s32.totalorder %s52, %s66
      %p68 = scmp.eq.s32.totalorder %s21, 0
      %p69 = por %p67, %p68
      %s71 = sadd.s32 %s70, 1
      %p74 = scmp.eq.s32.totalorder %s15, 1
      %p75 = scmp.ne.s32.totalorder %s70, %s72
      %p76 = scmp.eq.s32.totalorder %s15, 0
      %p77 = por %p75, %p76
      %p78 = scmp.ne.s32.totalorder %s70, %s72
      %p79 = scmp.eq.s32.totalorder %s20, 1
      %p80 = por %p78, %p79
      %p81 = scmp.ne.s32.totalorder %s72, %s73
      %p82 = scmp.eq.s32.totalorder %s20, 0
      %p83 = por %p81, %p82
      %p84 = scmp.ne.s32.totalorder %s72, %s73
      %p85 = scmp.eq.s32.totalorder %s21, 1
      %p86 = por %p84, %p85
      %p88 = scmp.ne.s32.totalorder %s73, %s87
      %p89 = scmp.eq.s32.totalorder %s21, 0
      %p90 = por %p88, %p89
      %s91 = ssub.s32 %s15, %s22
      %p92 = scmp.eq.s32.totalorder %s91, 0
      %s94 = sadd.s32 %s93, 1
      %s95 = scalar_select %p92, %s93, %s94
      %p98 = pneg %p92
      %p99 = scmp.eq.s32.totalorder %s15, 1
      %p100 = por %p98, %p99
      %p101 = scmp.ne.s32.totalorder %s93, %s96
      %p102 = scmp.eq.s32.totalorder %s15, 0
      %p103 = por %p101, %p102
      %p104 = scmp.ne.s32.totalorder %s93, %s96
      %p105 = scmp.eq.s32.totalorder %s20, 1
      %p106 = por %p104, %p105
      %p107 = scmp.ne.s32.totalorder %s96, %s97
      %p108 = scmp.eq.s32.totalorder %s20, 0
      %p109 = por %p107, %p108
      %p110 = scmp.ne.s32.totalorder %s96, %s97
      %p111 = scmp.eq.s32.totalorder %s21, 1
      %p112 = por %p110, %p111
      %p114 = scmp.ne.s32.totalorder %s97, %s113
      %p115 = scmp.eq.s32.totalorder %s21, 0
      %p116 = por %p114, %p115
      %p117 = scmp.le.s32.totalorder 1, %s15
      %p118 = scmp.lt.s32.totalorder %s15, 3
      %p119 = pnand %p117, %p118
      %p120 = pneg %p119
      // Predicated region
      $region9: #{se_layer.1} parent=5 // pred_check
        _
      $region10: #{se_layer.1} parent=5 // pred_check_branch
        %122 = sbr.rel (%p119) target = $region12
      $region11: #{se_layer.1} parent=5 // pred_region
        %s123 = ssub.s32 %s15, 1
        // Predicated region
        $region13: #{se_layer.1} parent=11 // pred_check
          %p124 = pneg %p62
        $region14: #{se_layer.1} parent=11 // pred_check_branch
          %126 = sbr.rel (%p124) target = $region16
        $region15: #{se_layer.1} parent=11 // pred_region
          _
        $region16: #{se_layer.1} parent=11 // pred_fallthru
          _
        // Predicated region
        $region17: #{se_layer.1} parent=11 // pred_check
          %p127 = pneg %p83
        $region18: #{se_layer.1} parent=11 // pred_check_branch
          %129 = sbr.rel (%p127) target = $region20
        $region19: #{se_layer.1} parent=11 // pred_region
          _
        $region20: #{se_layer.1} parent=11 // pred_fallthru
          _
      $region12: #{se_layer.1} parent=5 // pred_fallthru
        _
      %p130 = scmp.lt.s32.totalorder %s15, 2
      // Predicated region
      $region21: #{se_layer.1} parent=5 // pred_check
        %p131 = pneg %p130
      $region22: #{se_layer.1} parent=5 // pred_check_branch
        %133 = sbr.rel (%p131) target = $region24
      $region23: #{se_layer.1} parent=5 // pred_region
        // Predicated region
        $region25: #{se_layer.1} parent=23 // pred_check
          %p134 = pneg %p35
        $region26: #{se_layer.1} parent=23 // pred_check_branch
          %136 = sbr.rel (%p134) target = $region28
        $region27: #{se_layer.1} parent=23 // pred_region
          %s137 = sand.u32 %s25, 1
          %s138 = scalar_lea.sflag [#allocation3], %s137
          %s139 = sand.u32 %s25, 1
          %s140 = smul.addr %s139, 32
          %s141 = scalar_lea.vmem [#allocation2], %s140
          %s142 = smul.u32 2, %s15
          %s144 = ssub.s32 512, 512
          %145 = vsyncadd %s138, %s144
          %s146 = smul.addr %s142, 2
          %s147 = smul.addr %s146, 128
          %s148 = scalar_lea.hbm %s0, %s147
          %s149 = sshll.u32 %s141, 4
          %s150 = int_to_ptr.vmem [resolvable:$true] %s149
          %155 = dma.hbm_to_vmem [thread:$0]  %s148, 512, %s150, %s138, 128, 128, 8
        $region28: #{se_layer.1} parent=23 // pred_fallthru
          _
      $region24: #{se_layer.1} parent=5 // pred_fallthru
        _
      %p156 = scmp.le.s32.totalorder 1, %s15
      %p157 = scmp.lt.s32.totalorder %s15, 3
      %p158 = pnand %p156, %p157
      %p159 = pneg %p158
      // Predicated region
      $region29: #{se_layer.1} parent=5 // pred_check
        _
      $region30: #{se_layer.1} parent=5 // pred_check_branch
        %161 = sbr.rel (%p158) target = $region32
      $region31: #{se_layer.1} parent=5 // pred_region
        %s162 = ssub.s32 %s15, 1
        %s163 = sand.u32 %s28, 1
        %s164 = scalar_lea.sflag [#allocation3], %s163
        %s165 = sand.u32 %s28, 1
        %s166 = smul.addr %s165, 32
        %s167 = scalar_lea.vmem [#allocation2], %s166
        // Predicated region
        $region33: #{se_layer.1} parent=31 // pred_check
          %p168 = pneg %p41
        $region34: #{se_layer.1} parent=31 // pred_check_branch
          %170 = sbr.rel (%p168) target = $region36
        $region35: #{se_layer.1} parent=31 // pred_region
          %171 = dma.done %s164, 512
        $region36: #{se_layer.1} parent=31 // pred_fallthru
          _
        %s172 = sand.u32 %s28, 1
        %s173 = scalar_lea.sflag [#allocation3], %s172
        %s174 = sand.u32 %s28, 1
        %s175 = smul.addr %s174, 32
        %s176 = scalar_lea.vmem [#allocation2], %s175
        %p177 = pneg %p41
        %p178 = pneg %p38
        %p179 = pneg %p62
        %p180 = pneg %p59
        %p181 = pneg %p83
        %p182 = pneg %p80
        %p183 = pneg %p109
        %p184 = pneg %p106
        %s185 = sand.u32 %s96, 1
        %s186 = scalar_lea.sflag [#allocation4], %s185
        %s187 = sand.u32 %s96, 1
        %s188 = smul.addr %s187, 32
        %s189 = scalar_lea.vmem [#allocation5], %s188
        %s190 = smul.u32 2, %s20
        %s191 = smul.u32 2, %s20
        %v192 = vld [vmem:[%s167] sm:$0xff]
        %v193 = vld [vmem:[%s167 + $0x8] sm:$0xff]
        %v194 = vld [vmem:[%s167 + $0x10] sm:$0xff]
        %v195 = vld [vmem:[%s167 + $0x18] sm:$0xff]
        %196 = vadd.xlane.f32.xlu0 %v192
        %v197 = vpop.xlane.xlu0 %196
        %198 = vadd.xlane.f32.xlu0 %v193
        %v199 = vpop.xlane.xlu0 %198
        %200 = vadd.xlane.f32.xlu0 %v194
        %v201 = vpop.xlane.xlu0 %200
        %202 = vadd.xlane.f32.xlu0 %v195
        %v203 = vpop.xlane.xlu0 %202
        %v204 = vmul.f32 %v197, 0.0078125
        %v205 = vmul.f32 %v199, 0.0078125
        %v206 = vmul.f32 %v201, 0.0078125
        %v207 = vmul.f32 %v203, 0.0078125
        %v208 = vld [vmem:[%s1] sm:$0xff]
        %v209 = vld [vmem:[%s1 + $0x8] sm:$0xff]
        %v214 = vlaneseq
        %v215 = vand.u32 %v214, 127
        %v216 = vlaneseq
        %v217 = vshrl.u32 %v216, 7
        %v218 = vsub.s32 %v215, %v217
        %v219 = vrot.slane %v204, %v218
        %v220 = vadd.s32 %v215, 4294967288
        %v221 = vlaneseq
        %v222 = vshrl.u32 %v221, 7
        %v223 = vsub.s32 %v220, %v222
        %v224 = vrot.slane %v205, %v223
        %vm225 = vcmask 130112
        %v226 = vsel %vm225, %v224, %v219
        %v227 = vlaneseq
        %v228 = vshrl.u32 %v227, 7
        %v229 = vsub.s32 %v215, %v228
        %v230 = vrot.slane %v206, %v229
        %v231 = vlaneseq
        %v232 = vshrl.u32 %v231, 7
        %v233 = vsub.s32 %v220, %v232
        %v234 = vrot.slane %v207, %v233
        %v235 = vsel %vm225, %v234, %v230
        %vm236 = vcmask 1041409
        %v237 = vsel %vm236, %v235, %v226
        %vm238 = vcmask 130048
        %v239 = vsel %vm238, %v237, 0
        %241 = vmatprep.subr.mxu0 0.0
        %242 = vmatpush1.msra.mxu0 %v208
        %243 = vmatprep.subr.mxu0 0.0
        %244 = vmatpush1.msra.mxu0 %v209
        %245 = vmatprep.subr.mxu0 0.0
        %246 = vmatpush1.msra.mxu0 0.0
        %247 = vmatprep.subr.mxu0 0.0
        %248 = vmatpush1.msra.mxu0 0.0
        %249 = vmatprep.subr.mxu0 0.0
        %250 = vmatpush1.msra.mxu0 0.0
        %251 = vmatprep.subr.mxu0 0.0
        %252 = vmatpush1.msra.mxu0 0.0
        %253 = vmatprep.subr.mxu0 0.0
        %254 = vmatpush1.msra.mxu0 0.0
        %255 = vmatprep.subr.mxu0 0.0
        %256 = vmatpush1.msra.mxu0 0.0
        %257 = vmatprep.subr.mxu0 0.0
        %258 = vmatpush1.msra.mxu0 0.0
        %259 = vmatprep.subr.mxu0 0.0
        %260 = vmatpush1.msra.mxu0 0.0
        %261 = vmatprep.subr.mxu0 0.0
        %262 = vmatpush1.msra.mxu0 0.0
        %263 = vmatprep.subr.mxu0 0.0
        %264 = vmatpush1.msra.mxu0 0.0
        %265 = vmatprep.subr.mxu0 0.0
        %266 = vmatpush1.msra.mxu0 0.0
        %267 = vmatprep.subr.mxu0 0.0
        %268 = vmatpush1.msra.mxu0 0.0
        %269 = vmatprep.subr.mxu0 0.0
        %270 = vmatpush1.msra.mxu0 0.0
        %271 = vmatprep.subr.mxu0 0.0
        %272 = vmatpush1.msra.mxu0 0.0
        %273 = vmatprep.subr.mxu0 0.0
        %274 = vmatpush1.msra.mxu0 0.0
        %275 = vmatprep.subr.mxu0 0.0
        %276 = vmatpush1.msra.mxu0 0.0
        %277 = vmatprep.subr.mxu0 0.0
        %278 = vmatpush1.msra.mxu0 0.0
        %279 = vmatprep.subr.mxu0 0.0
        %280 = vmatpush1.msra.mxu0 0.0
        %281 = vmatprep.subr.mxu0 0.0
        %282 = vmatpush1.msra.mxu0 0.0
        %283 = vmatprep.subr.mxu0 0.0
        %284 = vmatpush1.msra.mxu0 0.0
        %285 = vmatprep.subr.mxu0 0.0
        %286 = vmatpush1.msra.mxu0 0.0
        %287 = vmatprep.subr.mxu0 0.0
        %288 = vmatpush1.msra.mxu0 0.0
        %289 = vmatprep.subr.mxu0 0.0
        %290 = vmatpush1.msra.mxu0 0.0
        %291 = vmatprep.subr.mxu0 0.0
        %292 = vmatpush1.msra.mxu0 0.0
        %293 = vmatprep.subr.mxu0 0.0
        %294 = vmatpush1.msra.mxu0 0.0
        %295 = vmatprep.subr.mxu0 0.0
        %296 = vmatpush1.msra.mxu0 0.0
        %297 = vmatprep.subr.mxu0 0.0
        %298 = vmatpush1.msra.mxu0 0.0
        %299 = vmatprep.subr.mxu0 0.0
        %300 = vmatpush1.msra.mxu0 0.0
        %301 = vmatprep.subr.mxu0 0.0
        %302 = vmatpush1.msra.mxu0 0.0
        %303 = vmatprep.subr.mxu0 0.0
        %304 = vmatpush1.msra.mxu0 0.0
        %305 = vmatprep.mubr.f32.mxu0 0.0
        %306 = vmatmul.mubr.f32.gmra.mrb[0].mxu0 %v239
        %v307 = vpop.f32.mrb[0].mxu0
        %v308 = vadd.f32 0.0, %v307
        %v309 = vpop.f32.mrb[0].mxu0
        %310 = vdwg.mxu0
        %v311 = vsub.f32 0.0, %v308
        %v312 = vmul.f32 %v311, 1.442695
        %v313 = vpow.pop %v312
        %v314 = vadd.f32 %v313, 1.0
        %v315 = vrcp.pop %v314
        %v316 = vmul.f32 1.0, %v315
        %v317 = vmul.f32 %v308, %v316
        %v318 = vld [vmem:[%s2] sm:$0xff]
        %vm319 = vcmask 64512
        %v321 = vsel %vm319, %v317, 0
        %323 = vmatprep.subr.mxu0 0.0
        %324 = vmatpush1.msra.mxu0 %v318
        %325 = vmatprep.subr.mxu0 0.0
        %326 = vmatpush1.msra.mxu0 0.0
        %327 = vmatprep.subr.mxu0 0.0
        %328 = vmatpush1.msra.mxu0 0.0
        %329 = vmatprep.subr.mxu0 0.0
        %330 = vmatpush1.msra.mxu0 0.0
        %331 = vmatprep.subr.mxu0 0.0
        %332 = vmatpush1.msra.mxu0 0.0
        %333 = vmatprep.subr.mxu0 0.0
        %334 = vmatpush1.msra.mxu0 0.0
        %335 = vmatprep.subr.mxu0 0.0
        %336 = vmatpush1.msra.mxu0 0.0
        %337 = vmatprep.subr.mxu0 0.0
        %338 = vmatpush1.msra.mxu0 0.0
        %339 = vmatprep.subr.mxu0 0.0
        %340 = vmatpush1.msra.mxu0 0.0
        %341 = vmatprep.subr.mxu0 0.0
        %342 = vmatpush1.msra.mxu0 0.0
        %343 = vmatprep.subr.mxu0 0.0
        %344 = vmatpush1.msra.mxu0 0.0
        %345 = vmatprep.subr.mxu0 0.0
        %346 = vmatpush1.msra.mxu0 0.0
        %347 = vmatprep.subr.mxu0 0.0
        %348 = vmatpush1.msra.mxu0 0.0
        %349 = vmatprep.subr.mxu0 0.0
        %350 = vmatpush1.msra.mxu0 0.0
        %351 = vmatprep.subr.mxu0 0.0
        %352 = vmatpush1.msra.mxu0 0.0
        %353 = vmatprep.subr.mxu0 0.0
        %354 = vmatpush1.msra.mxu0 0.0
        %355 = vmatprep.subr.mxu0 0.0
        %356 = vmatpush1.msra.mxu0 0.0
        %357 = vmatprep.subr.mxu0 0.0
        %358 = vmatpush1.msra.mxu0 0.0
        %359 = vmatprep.subr.mxu0 0.0
        %360 = vmatpush1.msra.mxu0 0.0
        %361 = vmatprep.subr.mxu0 0.0
        %362 = vmatpush1.msra.mxu0 0.0
        %363 = vmatprep.subr.mxu0 0.0
        %364 = vmatpush1.msra.mxu0 0.0
        %365 = vmatprep.subr.mxu0 0.0
        %366 = vmatpush1.msra.mxu0 0.0
        %367 = vmatprep.subr.mxu0 0.0
        %368 = vmatpush1.msra.mxu0 0.0
        %369 = vmatprep.subr.mxu0 0.0
        %370 = vmatpush1.msra.mxu0 0.0
        %371 = vmatprep.subr.mxu0 0.0
        %372 = vmatpush1.msra.mxu0 0.0
        %373 = vmatprep.subr.mxu0 0.0
        %374 = vmatpush1.msra.mxu0 0.0
        %375 = vmatprep.subr.mxu0 0.0
        %376 = vmatpush1.msra.mxu0 0.0
        %377 = vmatprep.subr.mxu0 0.0
        %378 = vmatpush1.msra.mxu0 0.0
        %379 = vmatprep.subr.mxu0 0.0
        %380 = vmatpush1.msra.mxu0 0.0
        %381 = vmatprep.subr.mxu0 0.0
        %382 = vmatpush1.msra.mxu0 0.0
        %383 = vmatprep.subr.mxu0 0.0
        %384 = vmatpush1.msra.mxu0 0.0
        %385 = vmatprep.subr.mxu0 0.0
        %386 = vmatpush1.msra.mxu0 0.0
        %387 = vmatprep.mubr.f32.mxu0 0.0
        %388 = vmatmul.mubr.f32.gmra.mrb[0].mxu0 %v321
        %v389 = vpop.f32.mrb[0].mxu0
        %v390 = vadd.f32 0.0, %v389
        %v391 = vpop.f32.mrb[0].mxu0
        %392 = vdwg.mxu0
        %v393 = vsub.f32 0.0, %v390
        %v394 = vmul.f32 %v393, 1.442695
        %v395 = vpow.pop %v394
        %v396 = vadd.f32 %v395, 1.0
        %v397 = vrcp.pop %v396
        %v398 = vmul.f32 1.0, %v397
        %v399 = vlaneseq
        %v400 = vshrl.u32 %v399, 7
        %v401 = vsub.s32 0, %v400
        %v402 = vrot.slane %v398, %v401
        %404 = vbcast.lane.b32.xlu0 %v402, 256
        %v405 = vpop.permute.xlu0 %404
        %s407 = sor.u32 256, 8
        %408 = vbcast.lane.b32.xlu0 %v402, %s407
        %v409 = vpop.permute.xlu0 %408
        %v410 = vlaneseq
        %v411 = vshrl.u32 %v410, 7
        %v412 = vsub.s32 1, %v411
        %v413 = vrot.slane %v398, %v412
        %415 = vbcast.lane.b32.xlu0 %v413, 256
        %v416 = vpop.permute.xlu0 %415
        %s418 = sor.u32 256, 8
        %419 = vbcast.lane.b32.xlu0 %v413, %s418
        %v420 = vpop.permute.xlu0 %419
        %v421 = vmul.f32 %v192, %v405
        %v422 = vmul.f32 %v193, %v409
        %v423 = vmul.f32 %v194, %v416
        %v424 = vmul.f32 %v195, %v420
        %425 = vst [vmem:[%s189] sm:$0xff] %v421
        %426 = vst [vmem:[%s189 + $0x8] sm:$0xff] %v422
        %427 = vst [vmem:[%s189 + $0x10] sm:$0xff] %v423
        %428 = vst [vmem:[%s189 + $0x18] sm:$0xff] %v424
        %s429 = sand.u32 %s96, 1
        %s430 = scalar_lea.sflag [#allocation4], %s429
        %s431 = sand.u32 %s96, 1
        %s432 = smul.addr %s431, 32
        %s433 = scalar_lea.vmem [#allocation5], %s432
        // Predicated region
        $region37: #{se_layer.1} parent=31 // pred_check
          %p434 = pneg %p106
        $region38: #{se_layer.1} parent=31 // pred_check_branch
          %436 = sbr.rel (%p434) target = $region40
        $region39: #{se_layer.1} parent=31 // pred_region
          %s437 = smul.u32 2, %s20
          %s439 = ssub.s32 512, 512
          %440 = vsyncadd %s430, %s439
          %s441 = smul.addr %s437, 2
          %s442 = smul.addr %s441, 128
          %s443 = scalar_lea.hbm %s3, %s442
          %s444 = sshll.u32 %s433, 4
          %s445 = int_to_ptr.vmem [resolvable:$true] %s444
          %450 = dma.vmem_to_hbm [thread:$0]  %s445, 512, %s443, %s430, 128, 128, 8
        $region40: #{se_layer.1} parent=31 // pred_fallthru
          _
      $region32: #{se_layer.1} parent=5 // pred_fallthru
        _
      %p451 = scmp.le.s32.totalorder 2, %s15
      // Predicated region
      $region41: #{se_layer.1} parent=5 // pred_check
        %p452 = pneg %p451
      $region42: #{se_layer.1} parent=5 // pred_check_branch
        %454 = sbr.rel (%p452) target = $region44
      $region43: #{se_layer.1} parent=5 // pred_region
        %s455 = ssub.s32 %s15, 2
        // Predicated region
        $region45: #{se_layer.1} parent=43 // pred_check
          %p456 = pneg %p112
        $region46: #{se_layer.1} parent=43 // pred_check_branch
          %458 = sbr.rel (%p456) target = $region48
        $region47: #{se_layer.1} parent=43 // pred_region
          %s459 = sand.u32 %s97, 1
          %s460 = scalar_lea.sflag [#allocation4], %s459
          %s461 = sand.u32 %s97, 1
          %s462 = smul.addr %s461, 32
          %s463 = scalar_lea.vmem [#allocation5], %s462
          %464 = dma.done %s460, 512
        $region48: #{se_layer.1} parent=43 // pred_fallthru
          _
      $region44: #{se_layer.1} parent=5 // pred_fallthru
        _
    $region6: #{se_layer.1} parent=1 // loop_footer
      %s19 = sadd.s32 1, %s15
    $region7: #{se_layer.1} parent=1 // loop_footer_branch
      %14 = sbr.rel target = $region3
    $region8: #{se_layer.1} parent=1 // loop_exit
      _
    %465 = vsyncpa [#allocation3], 1
    %s466 = scalar_lea.sflag [#allocation3], 1
    %467 = vsyncpa %s466, 1
    %468 = vsyncpa [#allocation4], 1
    %s469 = scalar_lea.sflag [#allocation4], 1
    %470 = vsyncpa %s469, 1

</llo_original>
